<compile_context>
chip_gen: v7x
topology: tpu7x:2x2x1
jax: 0.10.0
libtpu: 0.0.40
codegen_flags: <defaults>
</compile_context>

<pallas_src>
import numpy as np
import jax
import jax.numpy as jnp
from jax.experimental import pallas as pl
from jax.experimental.pallas import tpu as pltpu


def folded_linear_t_kernel(xt_ref, wt_ref, bt_ref, ot_ref):
    # y^T = W_eff^T @ x^T + b^T
    #   xt block: (13, tb)   wt: (3, 13)   bt: (3, 1)   out block: (3, tb)
    # Batch is on lanes -> lane-dense loads/stores; contraction K=13 on the MXU
    # with f32 accumulation (MXU shape is irrelevant at this size; DMA-bound).
    ot_ref[...] = (
        jnp.dot(wt_ref[...], xt_ref[...], preferred_element_type=jnp.float32)
        + bt_ref[...]
    ).astype(ot_ref.dtype)


def fold_params(params):
    """Fold 4 activation-free Linear layers into one transposed affine map.

    params: list of (W, b) with W shaped (out, in) like torch.nn.Linear.
    Returns W_eff_t (3, 13) and b_eff_t (3, 1) such that y^T = W_eff_t @ x^T + b_eff_t.
    Folded once at setup in float64 for safety, then cast to f32.
    """
    Ws = [np.asarray(W, np.float64) for (W, _) in params]
    bs = [np.asarray(b, np.float64) for (_, b) in params]
    W_t = Ws[0]            # (16, 13)
    b = bs[0]              # (16,)
    for Wk, bk in zip(Ws[1:], bs[1:]):
        W_t = Wk @ W_t     # chain:  W3 @ W2 @ W1 @ W0  -> (3, 13)
        b = Wk @ b + bk    # chain bias through the linears -> (3,)
    return jnp.asarray(W_t, jnp.float32), jnp.asarray(b, jnp.float32)[:, None]


def mlp_forward_t(xt, w_eff_t, b_eff_t, *, tb=32768):
    """Lane-dense forward: xt is (13, B) features-major, returns y^T of shape (3, B).

    Single block when B <= tb; otherwise a 1-D batch grid with tb a multiple of 128
    and a masked ragged tail (no padding / slicing on the HBM data path).
    """
    d_in, B = xt.shape
    d_out, d_in_w = w_eff_t.shape
    assert d_in == d_in_w

    if B <= tb:
        tb = B                     # one block; block shape == full array shape
        num_blocks = 1
    else:
        tb = (tb // 128) * 128     # lane multiple so ragged tiling is legal
        assert tb >= 128
        num_blocks = pl.cdiv(B, tb)

    cost = pl.CostEstimate(
        flops=2 * B * d_in * d_out,
        transcendentals=0,
        bytes_accessed=B * (d_in + d_out) * 4 + (d_in * d_out + d_out) * 4,
    )

    return pl.pallas_call(
        folded_linear_t_kernel,
        out_shape=jax.ShapeDtypeStruct((d_out, B), jnp.float32),
        grid=(num_blocks,),
        in_specs=[
            pl.BlockSpec((d_in, tb), lambda i: (0, i)),       # x^T batch tile (lane-dense)
            pl.BlockSpec((d_out, d_in), lambda i: (0, 0)),    # folded weights (resident)
            pl.BlockSpec((d_out, 1), lambda i: (0, 0)),       # folded bias (resident)
        ],
        out_specs=pl.BlockSpec((d_out, tb), lambda i: (0, i)),
        compiler_params=pltpu.CompilerParams(
            dimension_semantics=("parallel",),   # harmless on 1-TC chips; only helps
        ),                                       # on v7x once the grid has >= 2 big steps
        cost_estimate=cost,
    )(xt, w_eff_t, b_eff_t)


def mlp_forward(x, w_eff_t, b_eff_t, *, tb=32768):
    """Batch-major convenience wrapper matching the PyTorch module signature:
    x (B, 13) -> y (B, 3).  Prefer mlp_forward_t and feed features-major data /
    fuse the transpose into the upstream producer in production code."""
    return mlp_forward_t(x.T, w_eff_t, b_eff_t, tb=tb).T


def init_params(key):
    """Deterministic init matching torch.nn.Linear shapes: W (out, in), b (out,)."""
    dims = [(13, 16), (16, 8), (8, 4), (4, 3)]
    params = []
    for (fan_in, fan_out) in dims:
        key, kw, kb = jax.random.split(key, 3)
        bound = 1.0 / jnp.sqrt(fan_in)
        W = jax.random.uniform(kw, (fan_out, fan_in), jnp.float32, -bound, bound)
        b = jax.random.uniform(kb, (fan_out,), jnp.float32, -bound, bound)
        params.append((W, b))
    return params


def reference_forward(x, params):
    # Mirrors the PyTorch module exactly: four chained Linear layers, no activations.
    h = x
    for (W, b) in params:
        h = h @ W.T + b
    return h


if __name__ == "__main__":
    key = jax.random.PRNGKey(0)
    params = init_params(key)

    # Setup-time fold (hoisted out of the forward path).
    w_eff_t, b_eff_t = fold_params(params)
    w_eff_t, b_eff_t = jax.block_until_ready((w_eff_t, b_eff_t))

    # --- Small batch, single block.  Data produced directly in the lane-dense
    # (features, batch) layout; the logical batch-major x is xt.T (test-only view).
    B = 8
    key, kx = jax.random.split(key)
    xt = jax.random.normal(kx, (13, B), jnp.float32)
    yt = jax.block_until_ready(mlp_forward_t(xt, w_eff_t, b_eff_t))
    ref = reference_forward(xt.T, params)
    assert yt.shape == (3, B)
    assert jnp.allclose(yt.T, ref, atol=1e-4, rtol=1e-4)

    # Batch-major convenience wrapper (matches the PyTorch forward signature).
    y_bm = jax.block_until_ready(mlp_forward(xt.T, w_eff_t, b_eff_t))
    assert y_bm.shape == (B, 3)
    assert jnp.allclose(y_bm, ref, atol=1e-4, rtol=1e-4)

    # --- Multi-block grid with a ragged tail (no pad, masked writeback).
    B2 = 1000
    key, kx2 = jax.random.split(key)
    xt2 = jax.random.normal(kx2, (13, B2), jnp.float32)
    yt2 = jax.block_until_ready(mlp_forward_t(xt2, w_eff_t, b_eff_t, tb=256))
    ref2 = reference_forward(xt2.T, params)
    assert yt2.shape == (3, B2)
    assert jnp.allclose(yt2.T, ref2, atol=1e-4, rtol=1e-4)

    print("KERNEL_OK")
</pallas_src>

<mosaic_0001>
module attributes {stable_mosaic.version = 11 : i64} {
  func.func @folded_linear_t_kernel(%arg0: i32, %arg1: memref<13x8xf32, #tpu.memory_space<vmem>>, %arg2: memref<3x13xf32, #tpu.memory_space<vmem>>, %arg3: memref<3x1xf32, #tpu.memory_space<vmem>>, %arg4: memref<3x8xf32, #tpu.memory_space<vmem>>) attributes {dimension_semantics = [#tpu.dimension_semantics<parallel>], iteration_bounds = array<i64: 1>, scalar_prefetch = 0 : i64, scratch_operands = 0 : i64, tpu.core_type = #tpu.core_type<tc>, window_params = [{transform_indices = @transform_0, window_bounds = array<i64: 13, 8>}, {pipeline_mode = #tpu.pipeline_mode<synchronous>, transform_indices = @transform_1, window_bounds = array<i64: 3, 13>}, {pipeline_mode = #tpu.pipeline_mode<synchronous>, transform_indices = @transform_2, window_bounds = array<i64: 3, 1>}, {transform_indices = @transform_3, window_bounds = array<i64: 3, 8>}]} {
    %c0 = arith.constant 0 : index
    %c0_0 = arith.constant 0 : index
    %0 = vector.load %arg2[%c0, %c0_0] : memref<3x13xf32, #tpu.memory_space<vmem>>, vector<3x13xf32>
    %c0_1 = arith.constant 0 : index
    %c0_2 = arith.constant 0 : index
    %1 = vector.load %arg1[%c0_1, %c0_2] : memref<13x8xf32, #tpu.memory_space<vmem>>, vector<13x8xf32>
    %cst = arith.constant dense<0.000000e+00> : vector<3x8xf32>
    %2 = tpu.matmul %0, %1, %cst {dimension_numbers = #tpu.dot_dimension_numbers<[1], [0], [0], [1], [0, 0, 1, 1], [], []>} : vector<3x13xf32>, vector<13x8xf32>, vector<3x8xf32> -> vector<3x8xf32>
    %c0_3 = arith.constant 0 : index
    %c0_4 = arith.constant 0 : index
    %3 = vector.load %arg3[%c0_3, %c0_4] : memref<3x1xf32, #tpu.memory_space<vmem>>, vector<3x1xf32>
    %4 = vector.broadcast %3 : vector<3x1xf32> to vector<3x8xf32>
    %5 = arith.addf %2, %4 : vector<3x8xf32>
    %c0_5 = arith.constant 0 : index
    %c0_6 = arith.constant 0 : index
    %6 = vector.load %arg4[%c0_5, %c0_6] : memref<3x8xf32, #tpu.memory_space<vmem>>, vector<3x8xf32>
    tpu.vector_store %arg4[%c0_5, %c0_6], %5 {strides = array<i32>} : memref<3x8xf32, #tpu.memory_space<vmem>>, vector<3x8xf32>,
    return
  }
  func.func @transform_0(%arg0: i32) -> (i32, i32) {
    %c0_i32 = arith.constant 0 : i32
    %c0_i32_0 = arith.constant 0 : i32
    return %c0_i32, %arg0 : i32, i32
  }
  func.func @transform_1(%arg0: i32) -> (i32, i32) {
    %c0_i32 = arith.constant 0 : i32
    %c0_i32_0 = arith.constant 0 : i32
    %c0_i32_1 = arith.constant 0 : i32
    return %c0_i32, %c0_i32_0 : i32, i32
  }
  func.func @transform_2(%arg0: i32) -> (i32, i32) {
    %c0_i32 = arith.constant 0 : i32
    %c0_i32_0 = arith.constant 0 : i32
    %c0_i32_1 = arith.constant 0 : i32
    return %c0_i32, %c0_i32_0 : i32, i32
  }
  func.func @transform_3(%arg0: i32) -> (i32, i32) {
    %c0_i32 = arith.constant 0 : i32
    %c0_i32_0 = arith.constant 0 : i32
    return %c0_i32, %arg0 : i32, i32
  }
}

</mosaic_0001>

<llo_original>
// kernel: tpu_custom_call.1
$region0: #{tpu_custom_call.1}
  #allocation0 [shape = 'u32[]', space=smem, size = 0x4, offset = 0x4, fixed_abs, tag = 'smem constant byte address 0x4 - core index']
  #allocation1 [shape = 'u32[144,128]{1,0:T(1,128)}', space=vmem, size = 0x12000, scoped, tag = 'internal scratch']
  %s0 = inlined_call_operand.vmem [shape: f32[13,8], index: 0, kind: input, shape index: {}]
  %s1 = inlined_call_operand.vmem [shape: f32[3,13], index: 1, kind: input, shape index: {}]
  %s2 = inlined_call_operand.vmem [shape: f32[3,1], index: 2, kind: input, shape index: {}]
  %s3 = inlined_call_operand.hbm [shape: f32[3,8], index: 3, kind: output, shape index: {}]
  %s4 = sld [smem:[#allocation0]]
  $region22: #{tpu_custom_call.1} parent=0
    _
  %s6 = ssub.s32 1, %s4
  %s7 = scalar_select 0, %s6, %s4
  $region1: #{tpu_custom_call.1} parent=0
    #allocation2 [shape = 'u8[2048]{0}', space=vmem, size = 0x800, scoped, tag = 'output window, operand 0, single buffered']
    #allocation3 [shape = 's32[1]{0}', space=sflag, size = 0x4, scoped, tag = 'scoped memory for tpu_custom_call.1']
    %8 = vsyncpa [#allocation3], 0
    // Predicated region
    $region2: #{tpu_custom_call.1} parent=1 // pred_check
      _
    $region3: #{tpu_custom_call.1} parent=1 // pred_check_branch
      %10 = sbr.rel (0) target = $region5
    $region4: #{tpu_custom_call.1} parent=1 // pred_region
      _
    $region5: #{tpu_custom_call.1} parent=1 // pred_fallthru
      _
    // Predicated region
    $region6: #{tpu_custom_call.1} parent=1 // pred_check
      _
    $region7: #{tpu_custom_call.1} parent=1 // pred_check_branch
      %12 = sbr.rel (0) target = $region9
    $region8: #{tpu_custom_call.1} parent=1 // pred_region
      _
    $region9: #{tpu_custom_call.1} parent=1 // pred_fallthru
      _
    // Predicated region
    $region10: #{tpu_custom_call.1} parent=1 // pred_check
      _
    $region11: #{tpu_custom_call.1} parent=1 // pred_check_branch
      %14 = sbr.rel (0) target = $region13
    $region12: #{tpu_custom_call.1} parent=1 // pred_region
      _
    $region13: #{tpu_custom_call.1} parent=1 // pred_fallthru
      _
    %v15 = vld [vmem:[%s1] sm:$0x7]
    %v16 = vld [vmem:[%s0] sm:$0xff]
    %v17 = vld [vmem:[%s0 + $0x8] sm:$0x1f]
    %v18 = vld [vmem:[%s2] sm:$0x7]
    %20 = vset.pattern.permute.xlu0 0
    %21 = vperm.xlu0 %20, %v18
    %v22 = vpop.permute.xlu0 %21
    %vm24 = vcmask 105472
    %v26 = vsel %vm24, %v15, 0
    %vm28 = vcmask 1044480
    %v30 = vsel %vm28, %v17, 0
    %32 = vmatprep.subr.mxu0 0.0
    %33 = vmatpush1.msra.mxu0 %v16
    %34 = vmatprep.subr.mxu0 0.0
    %35 = vmatpush1.msra.mxu0 %v30
    %36 = vmatprep.subr.mxu0 0.0
    %37 = vmatpush1.msra.mxu0 0.0
    %38 = vmatprep.subr.mxu0 0.0
    %39 = vmatpush1.msra.mxu0 0.0
    %40 = vmatprep.subr.mxu0 0.0
    %41 = vmatpush1.msra.mxu0 0.0
    %42 = vmatprep.subr.mxu0 0.0
    %43 = vmatpush1.msra.mxu0 0.0
    %44 = vmatprep.subr.mxu0 0.0
    %45 = vmatpush1.msra.mxu0 0.0
    %46 = vmatprep.subr.mxu0 0.0
    %47 = vmatpush1.msra.mxu0 0.0
    %48 = vmatprep.subr.mxu0 0.0
    %49 = vmatpush1.msra.mxu0 0.0
    %50 = vmatprep.subr.mxu0 0.0
    %51 = vmatpush1.msra.mxu0 0.0
    %52 = vmatprep.subr.mxu0 0.0
    %53 = vmatpush1.msra.mxu0 0.0
    %54 = vmatprep.subr.mxu0 0.0
    %55 = vmatpush1.msra.mxu0 0.0
    %56 = vmatprep.subr.mxu0 0.0
    %57 = vmatpush1.msra.mxu0 0.0
    %58 = vmatprep.subr.mxu0 0.0
    %59 = vmatpush1.msra.mxu0 0.0
    %60 = vmatprep.subr.mxu0 0.0
    %61 = vmatpush1.msra.mxu0 0.0
    %62 = vmatprep.subr.mxu0 0.0
    %63 = vmatpush1.msra.mxu0 0.0
    %64 = vmatprep.subr.mxu0 0.0
    %65 = vmatpush1.msra.mxu0 0.0
    %66 = vmatprep.subr.mxu0 0.0
    %67 = vmatpush1.msra.mxu0 0.0
    %68 = vmatprep.subr.mxu0 0.0
    %69 = vmatpush1.msra.mxu0 0.0
    %70 = vmatprep.subr.mxu0 0.0
    %71 = vmatpush1.msra.mxu0 0.0
    %72 = vmatprep.subr.mxu0 0.0
    %73 = vmatpush1.msra.mxu0 0.0
    %74 = vmatprep.subr.mxu0 0.0
    %75 = vmatpush1.msra.mxu0 0.0
    %76 = vmatprep.subr.mxu0 0.0
    %77 = vmatpush1.msra.mxu0 0.0
    %78 = vmatprep.subr.mxu0 0.0
    %79 = vmatpush1.msra.mxu0 0.0
    %80 = vmatprep.subr.mxu0 0.0
    %81 = vmatpush1.msra.mxu0 0.0
    %82 = vmatprep.subr.mxu0 0.0
    %83 = vmatpush1.msra.mxu0 0.0
    %84 = vmatprep.subr.mxu0 0.0
    %85 = vmatpush1.msra.mxu0 0.0
    %86 = vmatprep.subr.mxu0 0.0
    %87 = vmatpush1.msra.mxu0 0.0
    %88 = vmatprep.subr.mxu0 0.0
    %89 = vmatpush1.msra.mxu0 0.0
    %90 = vmatprep.subr.mxu0 0.0
    %91 = vmatpush1.msra.mxu0 0.0
    %92 = vmatprep.subr.mxu0 0.0
    %93 = vmatpush1.msra.mxu0 0.0
    %94 = vmatprep.subr.mxu0 0.0
    %95 = vmatpush1.msra.mxu0 0.0
    %96 = vmatprep.mubr.f32.mxu0 0.0
    %97 = vmatmul.mubr.f32.gmra.mrb[0].mxu0 %v26
    %v98 = vpop.f32.mrb[0].mxu0
    %v99 = vadd.f32 %v22, %v98
    %v100 = vpop.f32.mrb[0].mxu0
    %101 = vdwg.mxu0
    %vm102 = vcmask 59392
    %103 = vst.msk [vmem:[#allocation2] sm:$0x7] %vm102, %v99
    // Predicated region
    $region14: #{tpu_custom_call.1} parent=1 // pred_check
      _
    $region15: #{tpu_custom_call.1} parent=1 // pred_check_branch
      %105 = sbr.rel (0) target = $region17
    $region16: #{tpu_custom_call.1} parent=1 // pred_region
      %s107 = ssub.s32 64, 64
      %108 = vsyncadd [#allocation3], %s107
      %s110 = sshll.u32 [#allocation2], 4
      %s111 = int_to_ptr.vmem [resolvable:$true] %s110
      %113 = dma.vmem_to_hbm [thread:$0]  %s111, 64, %s3, [#allocation3]
    $region17: #{tpu_custom_call.1} parent=1 // pred_fallthru
      _
    // Predicated region
    $region18: #{tpu_custom_call.1} parent=1 // pred_check
      _
    $region19: #{tpu_custom_call.1} parent=1 // pred_check_branch
      %115 = sbr.rel (0) target = $region21
    $region20: #{tpu_custom_call.1} parent=1 // pred_region
      %116 = dma.done [#allocation3], 64
    $region21: #{tpu_custom_call.1} parent=1 // pred_fallthru
      _
    %117 = vsyncpa [#allocation3], 1

</llo_original>
